<compile_context>
chip_gen: v5e
topology: v5e:2x2
jax: 0.10.0
libtpu: 0.0.40
codegen_flags: <defaults>
</compile_context>

<pallas_src>
import functools

import jax
import jax.numpy as jnp
from jax.experimental import pallas as pl
from jax.experimental.pallas import tpu as pltpu

# ----------------------------- model sizes ---------------------------------
N_USERS = 16        # rows of user_emb
N_ITEMS = 16        # rows of item_emb / item_content
EMB     = 32        # latent_size == rank_out == model_select[-1]
CONTENT = 48        # item_content_dim
HIDDEN  = 200       # model_select[0]
HIDDEN_PAD = 256    # fused/padded first-layer width (gate cols + linear1 cols + zero pad)
N_EXPERT = 3        # args.n_expert
N_DROPOUT = 0.5     # args.n_dropout

# ----------------------- slab-B row layout (8-row aligned) ------------------
_W2_ROWS  = HIDDEN_PAD          # rows   0:256  w2 (padded) + gate-sum selector column
_B2_ROW   = 256                 # row  256      b2
_WOUT_ROW = 264                 # rows 264:296  out_linear weight
_BOUT_ROW = 296                 # row  296      out_linear bias
_WFT_ROW  = 304                 # rows 304:336  final_trans weight
_BFT_ROW  = 336                 # row  336      final_trans bias
_SLAB_B_ROWS = 344
_SLAB_B_COLS = EMB + 1          # col EMB holds the gate-sum selector (1.0 in rows 0:N_EXPERT)


# ------------------------------ Pallas kernel -------------------------------
def heater_kernel(ui_ref, ca_ref, a_ref, b_ref, out_ref, *, n_users, n_dropout):
    f32 = jnp.float32

    # Fused first layer: tanh(C @ [Wg | W1 | 0] + [bg | b1 | 0]); bias folded via the
    # ones column of ca.  Gate columns are h_cat[:, :N_EXPERT] (already tanh'ed).
    h_cat = jnp.tanh(jnp.dot(ca_ref[...], a_ref[...],
                             preferred_element_type=f32))                 # [Ni, 256]

    # One MXU pass gives DenseFC.linear2 pre-activation (cols :EMB) AND gate_sum
    # (col EMB, via the ones-selector column).  Padded rows of B are zero, so the
    # tanh(0)=0 padding columns of h_cat contribute nothing.
    B = b_ref[...]
    m = jnp.dot(h_cat, B[:_W2_ROWS, :], preferred_element_type=f32)       # [Ni, EMB+1]
    expert = jnp.tanh(m[:, :EMB] + B[_B2_ROW:_B2_ROW + 1, :EMB])          # [Ni, EMB]
    gate_sum = m[:, EMB:EMB + 1]                                          # [Ni, 1]

    # Identical experts => bmm(gate, expert_stack) == gate_sum * expert.
    vc_last = jnp.tanh(gate_sum * expert)                                 # [Ni, EMB]

    ui = ui_ref[...]
    ue = ui[:n_users, :]                                                  # [Nu, EMB]
    ie = ui[n_users:, :]                                                  # [Ni, EMB]
    v_last = ie * (1.0 - n_dropout) + vc_last * n_dropout                 # [Ni, EMB]

    # Shared output head, run once on the row-stacked [user ; item] matrix.
    x = jnp.concatenate([ue, v_last], axis=0)                             # [Nu+Ni, EMB]
    h = jnp.tanh(jnp.dot(x, B[_WOUT_ROW:_WOUT_ROW + EMB, :EMB],
                         preferred_element_type=f32)
                 + B[_BOUT_ROW:_BOUT_ROW + 1, :EMB])
    y = (jnp.dot(h, B[_WFT_ROW:_WFT_ROW + EMB, :EMB],
                 preferred_element_type=f32)
         + B[_BFT_ROW:_BFT_ROW + 1, :EMB])                                # [Nu+Ni, EMB]

    # Direct split stores (no lane-concat temporary).
    out_ref[:, :EMB] = y[:n_users, :]
    out_ref[:, EMB:] = y[n_users:, :]


# ------------------------------ one-time packing ----------------------------
def pack_operands(user_emb, item_emb, item_content, params):
    """Run ONCE (param-load time).  Builds the 4 DMA slabs consumed by the kernel."""
    f32 = jnp.float32
    nu, d = user_emb.shape
    ni = item_emb.shape[0]
    assert nu == ni, "packed [N, 2D] output layout assumes N_USERS == N_ITEMS"
    assert d == EMB and item_content.shape[1] == CONTENT

    ui = jnp.concatenate([user_emb, item_emb], axis=0).astype(f32)        # [Nu+Ni, EMB]
    ca = jnp.concatenate([item_content.astype(f32),
                          jnp.ones((ni, 1), f32)], axis=1)                # [Ni, CONTENT+1]

    # Slab A: fused first layer, biases in the last row (matched by ca's ones column).
    a = jnp.zeros((CONTENT + 1, HIDDEN_PAD), f32)
    a = a.at[:CONTENT, :N_EXPERT].set(params["wg"])
    a = a.at[:CONTENT, N_EXPERT:N_EXPERT + HIDDEN].set(params["w1"])
    a = a.at[CONTENT, :N_EXPERT].set(params["bg"][0])
    a = a.at[CONTENT, N_EXPERT:N_EXPERT + HIDDEN].set(params["b1"][0])

    # Slab B: w2 (padded to HIDDEN_PAD rows) + gate-sum selector column, then the
    # small head params on 8-row-aligned offsets.
    b = jnp.zeros((_SLAB_B_ROWS, _SLAB_B_COLS), f32)
    b = b.at[N_EXPERT:N_EXPERT + HIDDEN, :EMB].set(params["w2"])
    b = b.at[:N_EXPERT, EMB].set(1.0)                 # gate-sum selector column
    b = b.at[_B2_ROW, :EMB].set(params["b2"][0])
    b = b.at[_WOUT_ROW:_WOUT_ROW + EMB, :EMB].set(params["wout"])
    b = b.at[_BOUT_ROW, :EMB].set(params["bout"][0])
    b = b.at[_WFT_ROW:_WFT_ROW + EMB, :EMB].set(params["wft"])
    b = b.at[_BFT_ROW, :EMB].set(params["bft"][0])
    return ui, ca, a, b


# ------------------------------ hot-path forward ----------------------------
@jax.jit
def heater_forward_packed(ui, ca, a, b):
    """Whole Heater_Learner.forward() hot path: one gridless pallas_call."""
    n = ui.shape[0] // 2
    ni = ca.shape[0]

    flops = 2 * (ni * ca.shape[1] * HIDDEN_PAD            # fused first layer
                 + ni * HIDDEN_PAD * _SLAB_B_COLS         # linear2 + gate_sum
                 + 2 * (2 * n) * EMB * EMB)               # out_linear + final_trans
    transc = ni * HIDDEN_PAD + 2 * ni * EMB + (2 * n) * EMB   # tanh count
    nbytes = 4 * (ui.size + ca.size + a.size + b.size + n * 2 * EMB)

    vmem = pl.BlockSpec(memory_space=pltpu.MemorySpace.VMEM)
    kernel = functools.partial(heater_kernel, n_users=n, n_dropout=N_DROPOUT)

    out = pl.pallas_call(
        kernel,
        out_shape=jax.ShapeDtypeStruct((n, 2 * EMB), jnp.float32),
        in_specs=[vmem, vmem, vmem, vmem],
        out_specs=vmem,
        cost_estimate=pl.CostEstimate(
            flops=flops, transcendentals=transc, bytes_accessed=nbytes),
    )(ui, ca, a, b)

    return out[:, :EMB], out[:, EMB:]   # u_out, i_out


# ------------------------------ reference (plain JAX) -----------------------
def heater_forward_ref(user_emb, item_emb, item_content, params):
    C = item_content
    h1 = jnp.tanh(C @ params["w1"] + params["b1"])
    expert = jnp.tanh(h1 @ params["w2"] + params["b2"])
    gate = jnp.tanh(C @ params["wg"] + params["bg"])
    vc_acc = jnp.zeros_like(expert)
    for e in range(N_EXPERT):                    # identical experts, explicit bmm order
        vc_acc = vc_acc + gate[:, e:e + 1] * expert
    vc_last = jnp.tanh(vc_acc)
    vin_filter = 1.0 - N_DROPOUT
    v_last = item_emb * vin_filter + vc_last * (1.0 - vin_filter)
    v_h = jnp.tanh(v_last @ params["wout"] + params["bout"])
    i_out = v_h @ params["wft"] + params["bft"]
    u_h = jnp.tanh(user_emb @ params["wout"] + params["bout"])
    u_out = u_h @ params["wft"] + params["bft"]
    return u_out, i_out


# ------------------------------ param init ----------------------------------
def init_params(key):
    """PyTorch-like init (uniform +-1/sqrt(fan_in)); weights [in, out], biases [1, out]."""
    def linear(key, fan_in, fan_out):
        kw, kb = jax.random.split(key)
        bound = 1.0 / jnp.sqrt(fan_in)
        w = jax.random.uniform(kw, (fan_in, fan_out), jnp.float32, -bound, bound)
        b = jax.random.uniform(kb, (1, fan_out), jnp.float32, -bound, bound)
        return w, b

    ks = jax.random.split(key, 5)
    w1, b1 = linear(ks[0], CONTENT, HIDDEN)       # DenseFC.linear1
    w2, b2 = linear(ks[1], HIDDEN, EMB)           # DenseFC.linear2
    wg, bg = linear(ks[2], CONTENT, N_EXPERT)     # Gate_func.linear
    wout, bout = linear(ks[3], EMB, EMB)          # Heater_encoder.out_linear
    wft, bft = linear(ks[4], EMB, EMB)            # Heater_encoder.final_trans
    return dict(w1=w1, b1=b1, w2=w2, b2=b2, wg=wg, bg=bg,
                wout=wout, bout=bout, wft=wft, bft=bft)


if __name__ == "__main__":
    key = jax.random.PRNGKey(0)
    k_u, k_i, k_c, k_p = jax.random.split(key, 4)

    user_emb = jax.random.normal(k_u, (N_USERS, EMB), jnp.float32)
    item_emb = jax.random.normal(k_i, (N_ITEMS, EMB), jnp.float32)
    item_content = jax.random.normal(k_c, (N_ITEMS, CONTENT), jnp.float32)
    params = init_params(k_p)

    # One-time packing (NOT in the per-call hot path).
    packed = jax.block_until_ready(
        pack_operands(user_emb, item_emb, item_content, params))

    u_out, i_out = heater_forward_packed(*packed)
    jax.block_until_ready((u_out, i_out))

    u_ref, i_ref = heater_forward_ref(user_emb, item_emb, item_content, params)
    assert u_out.shape == (N_USERS, EMB) and i_out.shape == (N_ITEMS, EMB)
    assert jnp.allclose(u_out, u_ref, atol=1e-4, rtol=1e-4)
    assert jnp.allclose(i_out, i_ref, atol=1e-4, rtol=1e-4)

    print("KERNEL_OK")
</pallas_src>

<mosaic_0001>
module attributes {stable_mosaic.version = 11 : i64} {
  func.func @heater_kernel(%arg0: memref<32x32xf32, #tpu.memory_space<vmem>>, %arg1: memref<16x49xf32, #tpu.memory_space<vmem>>, %arg2: memref<49x256xf32, #tpu.memory_space<vmem>>, %arg3: memref<344x33xf32, #tpu.memory_space<vmem>>, %arg4: memref<16x64xf32, #tpu.memory_space<vmem>>) attributes {dimension_semantics = [], scalar_prefetch = 0 : i64, scratch_operands = 0 : i64, tpu.core_type = #tpu.core_type<tc>} {
    %c0 = arith.constant 0 : index
    %c0_0 = arith.constant 0 : index
    %0 = vector.load %arg1[%c0, %c0_0] : memref<16x49xf32, #tpu.memory_space<vmem>>, vector<16x49xf32>
    %c0_1 = arith.constant 0 : index
    %c0_2 = arith.constant 0 : index
    %1 = vector.load %arg2[%c0_1, %c0_2] : memref<49x256xf32, #tpu.memory_space<vmem>>, vector<49x256xf32>
    %cst = arith.constant dense<0.000000e+00> : vector<16x256xf32>
    %2 = tpu.matmul %0, %1, %cst {dimension_numbers = #tpu.dot_dimension_numbers<[1], [0], [0], [1], [0, 0, 1, 1], [], []>} : vector<16x49xf32>, vector<49x256xf32>, vector<16x256xf32> -> vector<16x256xf32>
    %3 = math.tanh %2 : vector<16x256xf32>
    %c0_3 = arith.constant 0 : index
    %c0_4 = arith.constant 0 : index
    %4 = vector.load %arg3[%c0_3, %c0_4] : memref<344x33xf32, #tpu.memory_space<vmem>>, vector<344x33xf32>
    %5 = vector.extract_strided_slice %4 {offsets = [0, 0], sizes = [256, 33], strides = [1, 1]} : vector<344x33xf32> to vector<256x33xf32>
    %cst_5 = arith.constant dense<0.000000e+00> : vector<16x33xf32>
    %6 = tpu.matmul %3, %5, %cst_5 {dimension_numbers = #tpu.dot_dimension_numbers<[1], [0], [0], [1], [0, 0, 1, 1], [], []>} : vector<16x256xf32>, vector<256x33xf32>, vector<16x33xf32> -> vector<16x33xf32>
    %7 = vector.extract_strided_slice %6 {offsets = [0, 0], sizes = [16, 32], strides = [1, 1]} : vector<16x33xf32> to vector<16x32xf32>
    %8 = vector.extract_strided_slice %4 {offsets = [256, 0], sizes = [1, 32], strides = [1, 1]} : vector<344x33xf32> to vector<1x32xf32>
    %9 = vector.broadcast %8 : vector<1x32xf32> to vector<16x32xf32>
    %10 = arith.addf %7, %9 : vector<16x32xf32>
    %11 = math.tanh %10 : vector<16x32xf32>
    %12 = vector.extract_strided_slice %6 {offsets = [0, 32], sizes = [16, 1], strides = [1, 1]} : vector<16x33xf32> to vector<16x1xf32>
    %13 = vector.broadcast %12 : vector<16x1xf32> to vector<16x32xf32>
    %14 = arith.mulf %13, %11 : vector<16x32xf32>
    %15 = math.tanh %14 : vector<16x32xf32>
    %c0_6 = arith.constant 0 : index
    %c0_7 = arith.constant 0 : index
    %16 = vector.load %arg0[%c0_6, %c0_7] : memref<32x32xf32, #tpu.memory_space<vmem>>, vector<32x32xf32>
    %17 = vector.extract_strided_slice %16 {offsets = [0, 0], sizes = [16, 32], strides = [1, 1]} : vector<32x32xf32> to vector<16x32xf32>
    %18 = vector.extract_strided_slice %16 {offsets = [16, 0], sizes = [16, 32], strides = [1, 1]} : vector<32x32xf32> to vector<16x32xf32>
    %cst_8 = arith.constant 5.000000e-01 : f32
    %19 = vector.broadcast %cst_8 : f32 to vector<16x32xf32>
    %20 = arith.mulf %18, %19 : vector<16x32xf32>
    %cst_9 = arith.constant 5.000000e-01 : f32
    %21 = vector.broadcast %cst_9 : f32 to vector<16x32xf32>
    %22 = arith.mulf %15, %21 : vector<16x32xf32>
    %23 = arith.addf %20, %22 : vector<16x32xf32>
    %24 = tpu.concatenate %17, %23 in 0 : vector<16x32xf32>, vector<16x32xf32> -> vector<32x32xf32>
    %25 = vector.extract_strided_slice %4 {offsets = [264, 0], sizes = [32, 32], strides = [1, 1]} : vector<344x33xf32> to vector<32x32xf32>
    %cst_10 = arith.constant dense<0.000000e+00> : vector<32x32xf32>
    %26 = tpu.matmul %24, %25, %cst_10 {dimension_numbers = #tpu.dot_dimension_numbers<[1], [0], [0], [1], [0, 0, 1, 1], [], []>} : vector<32x32xf32>, vector<32x32xf32>, vector<32x32xf32> -> vector<32x32xf32>
    %27 = vector.extract_strided_slice %4 {offsets = [296, 0], sizes = [1, 32], strides = [1, 1]} : vector<344x33xf32> to vector<1x32xf32>
    %28 = vector.broadcast %27 : vector<1x32xf32> to vector<32x32xf32>
    %29 = arith.addf %26, %28 : vector<32x32xf32>
    %30 = math.tanh %29 : vector<32x32xf32>
    %31 = vector.extract_strided_slice %4 {offsets = [304, 0], sizes = [32, 32], strides = [1, 1]} : vector<344x33xf32> to vector<32x32xf32>
    %cst_11 = arith.constant dense<0.000000e+00> : vector<32x32xf32>
    %32 = tpu.matmul %30, %31, %cst_11 {dimension_numbers = #tpu.dot_dimension_numbers<[1], [0], [0], [1], [0, 0, 1, 1], [], []>} : vector<32x32xf32>, vector<32x32xf32>, vector<32x32xf32> -> vector<32x32xf32>
    %33 = vector.extract_strided_slice %4 {offsets = [336, 0], sizes = [1, 32], strides = [1, 1]} : vector<344x33xf32> to vector<1x32xf32>
    %34 = vector.broadcast %33 : vector<1x32xf32> to vector<32x32xf32>
    %35 = arith.addf %32, %34 : vector<32x32xf32>
    %36 = vector.extract_strided_slice %35 {offsets = [0, 0], sizes = [16, 32], strides = [1, 1]} : vector<32x32xf32> to vector<16x32xf32>
    %c0_12 = arith.constant 0 : index
    %c0_13 = arith.constant 0 : index
    %37 = vector.load %arg4[%c0_12, %c0_13] : memref<16x64xf32, #tpu.memory_space<vmem>>, vector<16x32xf32>
    tpu.vector_store %arg4[%c0_12, %c0_13], %36 {strides = array<i32>} : memref<16x64xf32, #tpu.memory_space<vmem>>, vector<16x32xf32>,
    %38 = vector.extract_strided_slice %35 {offsets = [16, 0], sizes = [16, 32], strides = [1, 1]} : vector<32x32xf32> to vector<16x32xf32>
    %c0_14 = arith.constant 0 : index
    %c32 = arith.constant 32 : index
    %39 = vector.load %arg4[%c0_14, %c32] : memref<16x64xf32, #tpu.memory_space<vmem>>, vector<16x32xf32>
    tpu.vector_store %arg4[%c0_14, %c32], %38 {strides = array<i32>} : memref<16x64xf32, #tpu.memory_space<vmem>>, vector<16x32xf32>,
    return
  }
}

</mosaic_0001>

<llo_original>
// kernel: heater_forward_packed.1
$region0: #{heater_forward_packed.1}
  #allocation0 [shape = 'u32[]', space=smem, size = 0x4, offset = 0x4, fixed_abs, tag = 'smem constant byte address 0x4 - core index']
  #allocation1 [shape = 'u32[72,128]{1,0:T(1,128)}', space=vmem, size = 0x9000, scoped, tag = 'internal scratch']
  %s0 = inlined_call_operand.vmem [shape: f32[32,32], index: 0, kind: input, shape index: {}]
  %s1 = inlined_call_operand.vmem [shape: f32[16,49], index: 1, kind: input, shape index: {}]
  %s2 = inlined_call_operand.vmem [shape: f32[49,256], index: 2, kind: input, shape index: {}]
  %s3 = inlined_call_operand.vmem [shape: f32[344,33], index: 3, kind: input, shape index: {}]
  %s4 = inlined_call_operand.vmem [shape: f32[16,64], index: 4, kind: output, shape index: {}]
  %s5 = sld [smem:[#allocation0]]
  $region26: #{heater_forward_packed.1} parent=0
    _
  %s7 = ssub.s32 1, %s5
  %s8 = scalar_select 0, %s7, %s5
  // Predicated region
  $region2: #{heater_forward_packed.1} parent=0 // pred_check
    _
  $region3: #{heater_forward_packed.1} parent=0 // pred_check_branch
    %10 = sbr.rel (0) target = $region5
  $region4: #{heater_forward_packed.1} parent=0 // pred_region
    _
  $region5: #{heater_forward_packed.1} parent=0 // pred_fallthru
    _
  // Predicated region
  $region6: #{heater_forward_packed.1} parent=0 // pred_check
    _
  $region7: #{heater_forward_packed.1} parent=0 // pred_check_branch
    %12 = sbr.rel (0) target = $region9
  $region8: #{heater_forward_packed.1} parent=0 // pred_region
    _
  $region9: #{heater_forward_packed.1} parent=0 // pred_fallthru
    _
  // Predicated region
  $region10: #{heater_forward_packed.1} parent=0 // pred_check
    _
  $region11: #{heater_forward_packed.1} parent=0 // pred_check_branch
    %14 = sbr.rel (0) target = $region13
  $region12: #{heater_forward_packed.1} parent=0 // pred_region
    _
  $region13: #{heater_forward_packed.1} parent=0 // pred_fallthru
    _
  // Predicated region
  $region14: #{heater_forward_packed.1} parent=0 // pred_check
    _
  $region15: #{heater_forward_packed.1} parent=0 // pred_check_branch
    %16 = sbr.rel (0) target = $region17
  $region16: #{heater_forward_packed.1} parent=0 // pred_region
    _
  $region17: #{heater_forward_packed.1} parent=0 // pred_fallthru
    _
  %v17 = vld [vmem:[%s1] sm:$0xff]
  %v18 = vld [vmem:[%s1 + $0x8] sm:$0xff]
  %v19 = vld [vmem:[%s2] sm:$0xff]
  %v20 = vld [vmem:[%s2 + $0x8] sm:$0xff]
  %v21 = vld [vmem:[%s2 + $0x10] sm:$0xff]
  %v22 = vld [vmem:[%s2 + $0x18] sm:$0xff]
  %v23 = vld [vmem:[%s2 + $0x20] sm:$0xff]
  %v24 = vld [vmem:[%s2 + $0x28] sm:$0xff]
  %v25 = vld [vmem:[%s2 + $0x30] sm:$0xff]
  %v26 = vld [vmem:[%s2 + $0x38] sm:$0xff]
  %v27 = vld [vmem:[%s2 + $0x40] sm:$0xff]
  %v28 = vld [vmem:[%s2 + $0x48] sm:$0xff]
  %v29 = vld [vmem:[%s2 + $0x50] sm:$0xff]
  %v30 = vld [vmem:[%s2 + $0x58] sm:$0xff]
  %v31 = vld [vmem:[%s2 + $0x60] sm:$0x1]
  %v32 = vld [vmem:[%s2 + $0x68] sm:$0x1]
  %vm33 = vcmask 400384
  %v35 = vsel %vm33, %v17, 0
  %v38 = vsel %vm33, %v18, 0
  %vm40 = vcmask 1040384
  %v42 = vsel %vm40, %v31, 0
  %v45 = vsel %vm40, %v32, 0
  %47 = vmatpush.msra.mxu0 0.0
  %48 = vmatpush.msra.mxu0 0.0
  %49 = vmatpush.msra.mxu0 0.0
  %50 = vmatpush.msra.mxu0 0.0
  %51 = vmatpush.msra.mxu0 0.0
  %52 = vmatpush.msra.mxu0 0.0
  %53 = vmatpush.msra.mxu0 0.0
  %54 = vmatpush.msra.mxu0 0.0
  %55 = vmatpush.msra.mxu0 0.0
  %56 = vmatpush.msra.mxu0 %v42
  %57 = vmatpush.msra.mxu0 %v29
  %58 = vmatpush.msra.mxu0 %v27
  %59 = vmatpush.msra.mxu0 %v25
  %60 = vmatpush.msra.mxu0 %v23
  %61 = vmatpush.msra.mxu0 %v21
  %62 = vmatpush.msra.mxu0 %v19
  %63 = vmatmul.f32.gmra.mxu0 %v35
  %v64 = vpop.f32.mrf.mxu0
  %v65 = vadd.f32 0.0, %v64
  %66 = vmatmul.f32.gmra.mxu0 %v38
  %v67 = vpop.f32.mrf.mxu0
  %v68 = vadd.f32 0.0, %v67
  %69 = vdwg.mxu0
  %70 = vmatpush.msra.mxu0 0.0
  %71 = vmatpush.msra.mxu0 0.0
  %72 = vmatpush.msra.mxu0 0.0
  %73 = vmatpush.msra.mxu0 0.0
  %74 = vmatpush.msra.mxu0 0.0
  %75 = vmatpush.msra.mxu0 0.0
  %76 = vmatpush.msra.mxu0 0.0
  %77 = vmatpush.msra.mxu0 0.0
  %78 = vmatpush.msra.mxu0 0.0
  %79 = vmatpush.msra.mxu0 %v45
  %80 = vmatpush.msra.mxu0 %v30
  %81 = vmatpush.msra.mxu0 %v28
  %82 = vmatpush.msra.mxu0 %v26
  %83 = vmatpush.msra.mxu0 %v24
  %84 = vmatpush.msra.mxu0 %v22
  %85 = vmatpush.msra.mxu0 %v20
  %86 = vmatmul.f32.gmra.mxu0 %v35
  %v87 = vpop.f32.mrf.mxu0
  %v88 = vadd.f32 0.0, %v87
  %89 = vmatmul.f32.gmra.mxu0 %v38
  %v90 = vpop.f32.mrf.mxu0
  %v91 = vadd.f32 0.0, %v90
  %92 = vdwg.mxu0
  %v93 = vtanh.pop %v65
  %v94 = vtanh.pop %v88
  %v95 = vtanh.pop %v68
  %v96 = vtanh.pop %v91
  %v97 = vld [vmem:[%s3] sm:$0xff]
  %v98 = vld [vmem:[%s3 + $0x8] sm:$0xff]
  %v99 = vld [vmem:[%s3 + $0x10] sm:$0xff]
  %v100 = vld [vmem:[%s3 + $0x18] sm:$0xff]
  %v101 = vld [vmem:[%s3 + $0x20] sm:$0xff]
  %v102 = vld [vmem:[%s3 + $0x28] sm:$0xff]
  %v103 = vld [vmem:[%s3 + $0x30] sm:$0xff]
  %v104 = vld [vmem:[%s3 + $0x38] sm:$0xff]
  %v105 = vld [vmem:[%s3 + $0x40] sm:$0xff]
  %v106 = vld [vmem:[%s3 + $0x48] sm:$0xff]
  %v107 = vld [vmem:[%s3 + $0x50] sm:$0xff]
  %v108 = vld [vmem:[%s3 + $0x58] sm:$0xff]
  %v109 = vld [vmem:[%s3 + $0x60] sm:$0xff]
  %v110 = vld [vmem:[%s3 + $0x68] sm:$0xff]
  %v111 = vld [vmem:[%s3 + $0x70] sm:$0xff]
  %v112 = vld [vmem:[%s3 + $0x78] sm:$0xff]
  %v113 = vld [vmem:[%s3 + $0x80] sm:$0xff]
  %v114 = vld [vmem:[%s3 + $0x88] sm:$0xff]
  %v115 = vld [vmem:[%s3 + $0x90] sm:$0xff]
  %v116 = vld [vmem:[%s3 + $0x98] sm:$0xff]
  %v117 = vld [vmem:[%s3 + $0xa0] sm:$0xff]
  %v118 = vld [vmem:[%s3 + $0xa8] sm:$0xff]
  %v119 = vld [vmem:[%s3 + $0xb0] sm:$0xff]
  %v120 = vld [vmem:[%s3 + $0xb8] sm:$0xff]
  %v121 = vld [vmem:[%s3 + $0xc0] sm:$0xff]
  %v122 = vld [vmem:[%s3 + $0xc8] sm:$0xff]
  %v123 = vld [vmem:[%s3 + $0xd0] sm:$0xff]
  %v124 = vld [vmem:[%s3 + $0xd8] sm:$0xff]
  %v125 = vld [vmem:[%s3 + $0xe0] sm:$0xff]
  %v126 = vld [vmem:[%s3 + $0xe8] sm:$0xff]
  %v127 = vld [vmem:[%s3 + $0xf0] sm:$0xff]
  %v128 = vld [vmem:[%s3 + $0xf8] sm:$0xff]
  %v129 = vld [vmem:[%s3 + $0x100] sm:$0xff]
  %v130 = vld [vmem:[%s3 + $0x108] sm:$0xff]
  %v131 = vld [vmem:[%s3 + $0x110] sm:$0xff]
  %v132 = vld [vmem:[%s3 + $0x118] sm:$0xff]
  %v133 = vld [vmem:[%s3 + $0x120] sm:$0xff]
  %v134 = vld [vmem:[%s3 + $0x128] sm:$0xff]
  %v135 = vld [vmem:[%s3 + $0x130] sm:$0xff]
  %v136 = vld [vmem:[%s3 + $0x138] sm:$0xff]
  %v137 = vld [vmem:[%s3 + $0x140] sm:$0xff]
  %v138 = vld [vmem:[%s3 + $0x148] sm:$0xff]
  %v139 = vld [vmem:[%s3 + $0x150] sm:$0xff]
  %140 = vmatpush.msra.mxu0 %v112
  %141 = vmatpush.msra.mxu0 %v111
  %142 = vmatpush.msra.mxu0 %v110
  %143 = vmatpush.msra.mxu0 %v109
  %144 = vmatpush.msra.mxu0 %v108
  %145 = vmatpush.msra.mxu0 %v107
  %146 = vmatpush.msra.mxu0 %v106
  %147 = vmatpush.msra.mxu0 %v105
  %148 = vmatpush.msra.mxu0 %v104
  %149 = vmatpush.msra.mxu0 %v103
  %150 = vmatpush.msra.mxu0 %v102
  %151 = vmatpush.msra.mxu0 %v101
  %152 = vmatpush.msra.mxu0 %v100
  %153 = vmatpush.msra.mxu0 %v99
  %154 = vmatpush.msra.mxu0 %v98
  %155 = vmatpush.msra.mxu0 %v97
  %156 = vmatmul.f32.gmra.mxu0 %v93
  %v157 = vpop.f32.mrf.mxu0
  %v158 = vadd.f32 0.0, %v157
  %159 = vmatmul.f32.gmra.mxu0 %v95
  %v160 = vpop.f32.mrf.mxu0
  %v161 = vadd.f32 0.0, %v160
  %162 = vdwg.mxu0
  %163 = vmatpush.msra.mxu0 %v128
  %164 = vmatpush.msra.mxu0 %v127
  %165 = vmatpush.msra.mxu0 %v126
  %166 = vmatpush.msra.mxu0 %v125
  %167 = vmatpush.msra.mxu0 %v124
  %168 = vmatpush.msra.mxu0 %v123
  %169 = vmatpush.msra.mxu0 %v122
  %170 = vmatpush.msra.mxu0 %v121
  %171 = vmatpush.msra.mxu0 %v120
  %172 = vmatpush.msra.mxu0 %v119
  %173 = vmatpush.msra.mxu0 %v118
  %174 = vmatpush.msra.mxu0 %v117
  %175 = vmatpush.msra.mxu0 %v116
  %176 = vmatpush.msra.mxu0 %v115
  %177 = vmatpush.msra.mxu0 %v114
  %178 = vmatpush.msra.mxu0 %v113
  %179 = vmatmul.f32.gmra.mxu0 %v94
  %v180 = vpop.f32.mrf.mxu0
  %v181 = vadd.f32 %v158, %v180
  %182 = vmatmul.f32.gmra.mxu0 %v96
  %v183 = vpop.f32.mrf.mxu0
  %v184 = vadd.f32 %v161, %v183
  %185 = vdwg.mxu0
  %v186 = vperm.slane %v129, 0
  %v187 = vadd.f32 %v181, %v186
  %v188 = vadd.f32 %v184, %v186
  %v189 = vtanh.pop %v187
  %v190 = vtanh.pop %v188
  %192 = vset.pattern.permute.xlu0 32
  %193 = vperm.xlu0 %192, %v181
  %v194 = vpop.permute.xlu0 %193
  %197 = vset.pattern.permute.xlu0 32
  %198 = vperm.xlu0 %197, %v184
  %v199 = vpop.permute.xlu0 %198
  %v201 = vmul.f32 %v194, %v189
  %v202 = vmul.f32 %v199, %v190
  %v203 = vtanh.pop %v201
  %v204 = vtanh.pop %v202
  %v205 = vld [vmem:[%s0] sm:$0xff]
  %v206 = vld [vmem:[%s0 + $0x8] sm:$0xff]
  %v207 = vld [vmem:[%s0 + $0x10] sm:$0xff]
  %v208 = vld [vmem:[%s0 + $0x18] sm:$0xff]
  %v209 = vmul.f32 %v207, 0.5
  %v210 = vmul.f32 %v208, 0.5
  %v211 = vmul.f32 %v203, 0.5
  %v212 = vmul.f32 %v204, 0.5
  %v213 = vadd.f32 %v209, %v211
  %v214 = vadd.f32 %v210, %v212
  %v215 = vperm.slane %v134, 0
  %vm216 = vcmask 261120
  %v218 = vsel %vm216, %v205, 0
  %v221 = vsel %vm216, %v206, 0
  %v224 = vsel %vm216, %v213, 0
  %v227 = vsel %vm216, %v214, 0
  %229 = vmatpush.msra.mxu0 0.0
  %230 = vmatpush.msra.mxu0 0.0
  %231 = vmatpush.msra.mxu0 0.0
  %232 = vmatpush.msra.mxu0 0.0
  %233 = vmatpush.msra.mxu0 0.0
  %234 = vmatpush.msra.mxu0 0.0
  %235 = vmatpush.msra.mxu0 0.0
  %236 = vmatpush.msra.mxu0 0.0
  %237 = vmatpush.msra.mxu0 0.0
  %238 = vmatpush.msra.mxu0 0.0
  %239 = vmatpush.msra.mxu0 0.0
  %240 = vmatpush.msra.mxu0 0.0
  %241 = vmatpush.msra.mxu0 %v133
  %242 = vmatpush.msra.mxu0 %v132
  %243 = vmatpush.msra.mxu0 %v131
  %244 = vmatpush.msra.mxu0 %v130
  %245 = vmatmul.f32.gmra.mxu0 %v218
  %v246 = vpop.f32.mrf.mxu0
  %v247 = vadd.f32 %v215, %v246
  %248 = vmatmul.f32.gmra.mxu0 %v221
  %v249 = vpop.f32.mrf.mxu0
  %v250 = vadd.f32 %v215, %v249
  %251 = vmatmul.f32.gmra.mxu0 %v224
  %v252 = vpop.f32.mrf.mxu0
  %v253 = vadd.f32 %v215, %v252
  %254 = vmatmul.f32.gmra.mxu0 %v227
  %v255 = vpop.f32.mrf.mxu0
  %v256 = vadd.f32 %v215, %v255
  %257 = vdwg.mxu0
  %v258 = vtanh.pop %v247
  %v259 = vtanh.pop %v250
  %v260 = vtanh.pop %v253
  %v261 = vtanh.pop %v256
  %v262 = vperm.slane %v139, 0
  %v264 = vsel %vm216, %v258, 0
  %v267 = vsel %vm216, %v259, 0
  %v270 = vsel %vm216, %v260, 0
  %v273 = vsel %vm216, %v261, 0
  %275 = vmatpush.msra.mxu0 0.0
  %276 = vmatpush.msra.mxu0 0.0
  %277 = vmatpush.msra.mxu0 0.0
  %278 = vmatpush.msra.mxu0 0.0
  %279 = vmatpush.msra.mxu0 0.0
  %280 = vmatpush.msra.mxu0 0.0
  %281 = vmatpush.msra.mxu0 0.0
  %282 = vmatpush.msra.mxu0 0.0
  %283 = vmatpush.msra.mxu0 0.0
  %284 = vmatpush.msra.mxu0 0.0
  %285 = vmatpush.msra.mxu0 0.0
  %286 = vmatpush.msra.mxu0 0.0
  %287 = vmatpush.msra.mxu0 %v138
  %288 = vmatpush.msra.mxu0 %v137
  %289 = vmatpush.msra.mxu0 %v136
  %290 = vmatpush.msra.mxu0 %v135
  %291 = vmatmul.f32.gmra.mxu0 %v264
  %v292 = vpop.f32.mrf.mxu0
  %v293 = vadd.f32 %v262, %v292
  %294 = vmatmul.f32.gmra.mxu0 %v267
  %v295 = vpop.f32.mrf.mxu0
  %v296 = vadd.f32 %v262, %v295
  %297 = vmatmul.f32.gmra.mxu0 %v270
  %v298 = vpop.f32.mrf.mxu0
  %v299 = vadd.f32 %v262, %v298
  %300 = vmatmul.f32.gmra.mxu0 %v273
  %v301 = vpop.f32.mrf.mxu0
  %v302 = vadd.f32 %v262, %v301
  %303 = vdwg.mxu0
  %304 = vst.msk [vmem:[%s4] sm:$0xff] %vm216, %v293
  %305 = vst.msk [vmem:[%s4 + $0x8] sm:$0xff] %vm216, %v296
  %308 = vrot.lane.b32.xlu0 %v299, 32
  %v309 = vpop.permute.xlu0 %308
  %310 = vrot.lane.b32.xlu0 %v302, 32
  %v311 = vpop.permute.xlu0 %310
  %vm314 = vcmask 523520
  %315 = vst.msk [vmem:[%s4] sm:$0xff] %vm314, %v309
  %316 = vst.msk [vmem:[%s4 + $0x8] sm:$0xff] %vm314, %v311
  // Predicated region
  $region18: #{heater_forward_packed.1} parent=0 // pred_check
    _
  $region19: #{heater_forward_packed.1} parent=0 // pred_check_branch
    %318 = sbr.rel (0) target = $region21
  $region20: #{heater_forward_packed.1} parent=0 // pred_region
    _
  $region21: #{heater_forward_packed.1} parent=0 // pred_fallthru
    _
  // Predicated region
  $region22: #{heater_forward_packed.1} parent=0 // pred_check
    _
  $region23: #{heater_forward_packed.1} parent=0 // pred_check_branch
    %320 = sbr.rel (0) target = $region25
  $region24: #{heater_forward_packed.1} parent=0 // pred_region
    _
  $region25: #{heater_forward_packed.1} parent=0 // pred_fallthru
    _

</llo_original>
